<compile_context>
chip_gen: v5e
topology: v5e:2x2
jax: 0.10.0
libtpu: 0.0.40
codegen_flags: <defaults>
</compile_context>

<pallas_src>
import jax
import jax.numpy as jnp
from jax.experimental import pallas as pl
from jax.experimental.pallas import tpu as pltpu


def _softmax_stable_kernel(x_ref, o_ref):
    # x_ref / o_ref: (rows, TILE_C) VMEM tiles; columns are fully independent.
    x = x_ref[...].astype(jnp.float32)
    c = jnp.max(x, axis=0, keepdims=True)          # per-column stabilizer (cancels)
    e = jnp.exp(x - c)                             # numerically stable exp
    denom = jnp.sum(e, axis=0, keepdims=True)      # per-column sum over axis 0
    inv = 1.0 / denom                              # exact reciprocal, one per column
    o_ref[...] = (e * inv).astype(o_ref.dtype)


def _round_up(n, m):
    return ((n + m - 1) // m) * m


def softmax_stable(x, *, target_tile_bytes=4 * 1024 * 1024, vmem_limit_bytes=None):
    """Pallas implementation of the softmax_stable module's forward pass (2-D input)."""
    assert x.ndim == 2, "kernel expects a 2-D array [rows, cols]"
    rows, cols = x.shape
    dtype_size = jnp.dtype(x.dtype).itemsize

    # --- generation-aware scoped VMEM limit ---------------------------------------
    if vmem_limit_bytes is None:
        try:
            vmem_cap = pltpu.get_tpu_info().vmem_capacity_bytes
        except Exception:
            vmem_cap = 64 * 1024 * 1024            # conservative (v7x-sized) fallback
        # ~3/4 of physical VMEM, capped at 100 MiB: ≈96 MiB on v5e/v6e, ≈48 MiB on v7x.
        vmem_limit_bytes = min(vmem_cap * 3 // 4, 100 * 1024 * 1024)
    vmem_limit_bytes = int(vmem_limit_bytes)

    # --- choose the column tile (size by bytes, single VMEM estimate) -------------
    # Per-step working set ≈ double-buffered in + out tiles (dtype) + ~2 f32 temps.
    per_col_bytes = rows * (4 * dtype_size + 2 * 4)
    budget_cols_vmem = max(128, vmem_limit_bytes // per_col_bytes)
    budget_cols_bytes = max(128, target_tile_bytes // (rows * dtype_size))

    cols_128 = _round_up(cols, 128)
    tile_c = min(budget_cols_vmem, budget_cols_bytes, cols_128)
    tile_c = max(128, (tile_c // 128) * 128)

    # Guarantee >= 2 column tiles when cols allows, so the "parallel" axis can be
    # sharded across v7x's two TensorCores (no effect on single-core v5e/v6e).
    if cols_128 >= 256:
        tile_c = min(tile_c, max(128, ((cols_128 // 2) // 128) * 128))

    # Pad columns so the lane-dense tile evenly divides the array (padded columns
    # are independent and sliced off afterwards; zero padding stays finite).
    cols_p = _round_up(cols, tile_c)
    x_p = x if cols_p == cols else jnp.pad(x, ((0, 0), (0, cols_p - cols)))

    # TODO(synk): for very tall inputs where a (rows, 128) f32 strip exceeds the VMEM
    # budget (earlier on v7x's 64 MiB), add a row-tiled two-pass variant (partial
    # per-column sums with an "arbitrary" row axis, then normalize).

    grid = (cols_p // tile_c,)

    out = pl.pallas_call(
        _softmax_stable_kernel,
        out_shape=jax.ShapeDtypeStruct((rows, cols_p), x.dtype),
        grid=grid,
        in_specs=[pl.BlockSpec((rows, tile_c), lambda j: (0, j))],
        out_specs=pl.BlockSpec((rows, tile_c), lambda j: (0, j)),
        compiler_params=pltpu.CompilerParams(
            dimension_semantics=("parallel",),     # independent column tiles
            vmem_limit_bytes=vmem_limit_bytes,
        ),
    )(x_p)

    return out if cols_p == cols else out[:, :cols]


if __name__ == "__main__":
    key = jax.random.PRNGKey(0)
    # Small, lane-aligned shape consistent with the module (elementwise + axis-0 reduce).
    x = jax.random.normal(key, (8, 1024), dtype=jnp.float32)

    # Default tile sizing yields 2 column tiles of 512 here (multi-step, double-buffered
    # grid that also exercises the v7x two-TensorCore path).
    out = jax.block_until_ready(softmax_stable(x))

    # Reference in plain JAX, mirroring the PyTorch forward exactly.
    c = jnp.max(x)
    e = jnp.exp(x - c)
    ref = e / jnp.sum(e, axis=0, keepdims=True)

    assert out.shape == x.shape and out.dtype == x.dtype
    err = float(jnp.max(jnp.abs(out - ref)))
    assert jnp.allclose(out, ref, atol=1e-5, rtol=1e-5), err

    print("KERNEL_OK")
</pallas_src>

<mosaic_0001>
module attributes {stable_mosaic.version = 11 : i64} {
  func.func @_softmax_stable_kernel(%arg0: i32, %arg1: memref<8x512xf32, #tpu.memory_space<vmem>>, %arg2: memref<8x512xf32, #tpu.memory_space<vmem>>) attributes {dimension_semantics = [#tpu.dimension_semantics<parallel>], iteration_bounds = array<i64: 2>, scalar_prefetch = 0 : i64, scratch_operands = 0 : i64, tpu.core_type = #tpu.core_type<tc>, window_params = [{transform_indices = @transform_0, window_bounds = array<i64: 8, 512>}, {transform_indices = @transform_1, window_bounds = array<i64: 8, 512>}]} {
    %c0 = arith.constant 0 : index
    %c0_0 = arith.constant 0 : index
    %0 = vector.load %arg1[%c0, %c0_0] : memref<8x512xf32, #tpu.memory_space<vmem>>, vector<8x512xf32>
    %cst = arith.constant dense<0xFF800000> : vector<512xf32>
    %1 = vector.multi_reduction <maximumf>, %0, %cst [0] : vector<8x512xf32> to vector<512xf32>
    %2 = vector.shape_cast %1 : vector<512xf32> to vector<1x512xf32>
    %3 = vector.broadcast %2 : vector<1x512xf32> to vector<8x512xf32>
    %4 = arith.subf %0, %3 : vector<8x512xf32>
    %5 = math.exp %4 : vector<8x512xf32>
    %cst_1 = arith.constant dense<0.000000e+00> : vector<512xf32>
    %6 = vector.multi_reduction <add>, %5, %cst_1 [0] : vector<8x512xf32> to vector<512xf32>
    %7 = vector.shape_cast %6 : vector<512xf32> to vector<1x512xf32>
    %cst_2 = arith.constant 1.000000e+00 : f32
    %8 = vector.broadcast %cst_2 : f32 to vector<1x512xf32>
    %9 = arith.divf %8, %7 : vector<1x512xf32>
    %10 = vector.broadcast %9 : vector<1x512xf32> to vector<8x512xf32>
    %11 = arith.mulf %5, %10 : vector<8x512xf32>
    %c0_3 = arith.constant 0 : index
    %c0_4 = arith.constant 0 : index
    %12 = vector.load %arg2[%c0_3, %c0_4] : memref<8x512xf32, #tpu.memory_space<vmem>>, vector<8x512xf32>
    tpu.vector_store %arg2[%c0_3, %c0_4], %11 {strides = array<i32>} : memref<8x512xf32, #tpu.memory_space<vmem>>, vector<8x512xf32>,
    return
  }
  func.func @transform_0(%arg0: i32) -> (i32, i32) {
    %c0_i32 = arith.constant 0 : i32
    %c0_i32_0 = arith.constant 0 : i32
    return %c0_i32, %arg0 : i32, i32
  }
  func.func @transform_1(%arg0: i32) -> (i32, i32) {
    %c0_i32 = arith.constant 0 : i32
    %c0_i32_0 = arith.constant 0 : i32
    return %c0_i32, %arg0 : i32, i32
  }
}

</mosaic_0001>

<llo_original>
// kernel: tpu_custom_call.1
$region0: #{tpu_custom_call.1}
  #allocation0 [shape = 'u32[]', space=smem, size = 0x4, offset = 0x4, fixed_abs, tag = 'smem constant byte address 0x4 - core index']
  #allocation1 [shape = 'u32[72,128]{1,0:T(1,128)}', space=vmem, size = 0x9000, scoped, tag = 'internal scratch']
  %s0 = inlined_call_operand.hbm [shape: f32[8,1024], index: 0, kind: input, shape index: {}]
  %s1 = inlined_call_operand.hbm [shape: f32[8,1024], index: 1, kind: output, shape index: {}]
  %s2 = sld [smem:[#allocation0]]
  $region41: #{tpu_custom_call.1} parent=0
    _
  %s4 = ssub.s32 1, %s2
  %s5 = scalar_select 0, %s4, %s2
  $region1: #{tpu_custom_call.1} parent=0
    #allocation2 [shape = 'u8[32768]{0}', space=vmem, size = 0x8000, scoped, tag = 'input window, operand 0']
    #allocation3 [shape = 's32[2]{0}', space=sflag, size = 0x8, scoped, tag = 'scoped memory for tpu_custom_call.1']
    #allocation4 [shape = 's32[2]{0}', space=sflag, size = 0x8, scoped, tag = 'scoped memory for tpu_custom_call.1']
    #allocation5 [shape = 'u8[32768]{0}', space=vmem, size = 0x8000, scoped, tag = 'output window, operand 0']
    %6 = vsyncpa [#allocation3], 0
    %s7 = scalar_lea.sflag [#allocation3], 1
    %8 = vsyncpa %s7, 0
    %9 = vsyncpa [#allocation4], 0
    %s10 = scalar_lea.sflag [#allocation4], 1
    %11 = vsyncpa %s10, 0
    loop: start=0, step=1, limit=4
    $region2: #{tpu_custom_call.1} parent=1 // loop_pre_header
      _
    $region3: #{tpu_custom_call.1} parent=1 // loop_header
      %s13 = sphi 0, %s17
      %p14 = scmp.ge.s32.totalorder %s13, 4
      %s23 = sphi 0, %s25
      %s26 = sphi 0, %s23
      %s27 = sphi 0, %s26
      %s43 = sphi 0, %s27
      %s49 = sphi 0, %s51
      %s52 = sphi 0, %s49
      %s53 = sphi 0, %s52
      %s69 = sphi 0, %s53
    $region4: #{tpu_custom_call.1} parent=1 // loop_header_branch
      %16 = sbr.rel (%p14) target = $region8
    $region5: #{tpu_custom_call.1} parent=1 // loop_body
      %s18 = ssub.s32 %s13, 1
      %s19 = ssub.s32 %s13, 2
      %s20 = sadd.s32 %s13, 1
      %s21 = ssub.s32 %s13, %s20
      %p22 = scmp.eq.s32.totalorder %s21, 0
      %s24 = sadd.s32 %s23, 1
      %s25 = scalar_select %p22, %s23, %s24
      %p28 = pneg %p22
      %p29 = scmp.eq.s32.totalorder %s13, 1
      %p30 = por %p28, %p29
      %p31 = scmp.ne.s32.totalorder %s23, %s26
      %p32 = scmp.eq.s32.totalorder %s13, 0
      %p33 = por %p31, %p32
      %p34 = scmp.ne.s32.totalorder %s23, %s26
      %p35 = scmp.eq.s32.totalorder %s18, 1
      %p36 = por %p34, %p35
      %p37 = scmp.ne.s32.totalorder %s26, %s27
      %p38 = scmp.eq.s32.totalorder %s18, 0
      %p39 = por %p37, %p38
      %p40 = scmp.ne.s32.totalorder %s26, %s27
      %p41 = scmp.eq.s32.totalorder %s19, 1
      %p42 = por %p40, %p41
      %p44 = scmp.ne.s32.totalorder %s27, %s43
      %p45 = scmp.eq.s32.totalorder %s19, 0
      %p46 = por %p44, %p45
      %s47 = ssub.s32 %s13, %s20
      %p48 = scmp.eq.s32.totalorder %s47, 0
      %s50 = sadd.s32 %s49, 1
      %s51 = scalar_select %p48, %s49, %s50
      %p54 = pneg %p48
      %p55 = scmp.eq.s32.totalorder %s13, 1
      %p56 = por %p54, %p55
      %p57 = scmp.ne.s32.totalorder %s49, %s52
      %p58 = scmp.eq.s32.totalorder %s13, 0
      %p59 = por %p57, %p58
      %p60 = scmp.ne.s32.totalorder %s49, %s52
      %p61 = scmp.eq.s32.totalorder %s18, 1
      %p62 = por %p60, %p61
      %p63 = scmp.ne.s32.totalorder %s52, %s53
      %p64 = scmp.eq.s32.totalorder %s18, 0
      %p65 = por %p63, %p64
      %p66 = scmp.ne.s32.totalorder %s52, %s53
      %p67 = scmp.eq.s32.totalorder %s19, 1
      %p68 = por %p66, %p67
      %p70 = scmp.ne.s32.totalorder %s53, %s69
      %p71 = scmp.eq.s32.totalorder %s19, 0
      %p72 = por %p70, %p71
      %p73 = scmp.le.s32.totalorder 1, %s13
      %p74 = scmp.lt.s32.totalorder %s13, 3
      %p75 = pnand %p73, %p74
      %p76 = pneg %p75
      // Predicated region
      $region9: #{tpu_custom_call.1} parent=5 // pred_check
        _
      $region10: #{tpu_custom_call.1} parent=5 // pred_check_branch
        %78 = sbr.rel (%p75) target = $region12
      $region11: #{tpu_custom_call.1} parent=5 // pred_region
        %s79 = ssub.s32 %s13, 1
      $region12: #{tpu_custom_call.1} parent=5 // pred_fallthru
        _
      %p80 = scmp.lt.s32.totalorder %s13, 2
      // Predicated region
      $region13: #{tpu_custom_call.1} parent=5 // pred_check
        %p81 = pneg %p80
      $region14: #{tpu_custom_call.1} parent=5 // pred_check_branch
        %83 = sbr.rel (%p81) target = $region16
      $region15: #{tpu_custom_call.1} parent=5 // pred_region
        // Predicated region
        $region17: #{tpu_custom_call.1} parent=15 // pred_check
          %p84 = pneg %p33
        $region18: #{tpu_custom_call.1} parent=15 // pred_check_branch
          %86 = sbr.rel (%p84) target = $region20
        $region19: #{tpu_custom_call.1} parent=15 // pred_region
          %s87 = sand.u32 %s23, 1
          %s88 = scalar_lea.sflag [#allocation3], %s87
          %s89 = sand.u32 %s23, 1
          %s90 = smul.addr %s89, 32
          %s91 = scalar_lea.vmem [#allocation2], %s90
          %s92 = smul.u32 4, %s13
          %94 = vsyncadd %s88, 0
          %s95 = smul.addr %s92, 8
          %s96 = scalar_lea.hbm %s0, %s95
          %s98 = sshll.u32 %s96, 4
          %s99 = int_to_ptr.hbm [resolvable:$true] %s98
          %s100 = sshll.u32 %s91, 4
          %s101 = int_to_ptr.vmem [resolvable:$true] %s100
          %103 = dma.hbm_to_vmem [thread:$0]  %s99, 512, %s101, %s88
        $region20: #{tpu_custom_call.1} parent=15 // pred_fallthru
          _
      $region16: #{tpu_custom_call.1} parent=5 // pred_fallthru
        _
      %p104 = scmp.le.s32.totalorder 1, %s13
      %p105 = scmp.lt.s32.totalorder %s13, 3
      %p106 = pnand %p104, %p105
      %p107 = pneg %p106
      // Predicated region
      $region21: #{tpu_custom_call.1} parent=5 // pred_check
        _
      $region22: #{tpu_custom_call.1} parent=5 // pred_check_branch
        %109 = sbr.rel (%p106) target = $region24
      $region23: #{tpu_custom_call.1} parent=5 // pred_region
        %s110 = ssub.s32 %s13, 1
        %s111 = sand.u32 %s26, 1
        %s112 = scalar_lea.sflag [#allocation3], %s111
        %s113 = sand.u32 %s26, 1
        %s114 = smul.addr %s113, 32
        %s115 = scalar_lea.vmem [#allocation2], %s114
        // Predicated region
        $region25: #{tpu_custom_call.1} parent=23 // pred_check
          %p116 = pneg %p39
        $region26: #{tpu_custom_call.1} parent=23 // pred_check_branch
          %118 = sbr.rel (%p116) target = $region28
        $region27: #{tpu_custom_call.1} parent=23 // pred_region
          %120 = dma.done %s112, 512
        $region28: #{tpu_custom_call.1} parent=23 // pred_fallthru
          _
        %s121 = sand.u32 %s26, 1
        %s122 = scalar_lea.sflag [#allocation3], %s121
        %s123 = sand.u32 %s26, 1
        %s124 = smul.addr %s123, 32
        %s125 = scalar_lea.vmem [#allocation2], %s124
        %p126 = pneg %p39
        %p127 = pneg %p36
        %p128 = pneg %p65
        %p129 = pneg %p62
        %s130 = sand.u32 %s52, 1
        %s131 = scalar_lea.sflag [#allocation4], %s130
        %s132 = sand.u32 %s52, 1
        %s133 = smul.addr %s132, 32
        %s134 = scalar_lea.vmem [#allocation5], %s133
        %s135 = smul.u32 4, %s18
        %s136 = smul.u32 4, %s18
        %v137 = vld [vmem:[%s115] sm:$0xff]
        %v138 = vld [vmem:[%s115 + $0x8] sm:$0xff]
        %v139 = vld [vmem:[%s115 + $0x10] sm:$0xff]
        %v140 = vld [vmem:[%s115 + $0x18] sm:$0xff]
        %v141 = vrot.slane %v137, 4
        %v142 = vmax.f32 %v137, %v141
        %v143 = vrot.slane %v142, 2
        %v144 = vmax.f32 %v142, %v143
        %v145 = vrot.slane %v144, 1
        %v146 = vmax.f32 %v144, %v145
        %v147 = vrot.slane %v138, 4
        %v148 = vmax.f32 %v138, %v147
        %v149 = vrot.slane %v148, 2
        %v150 = vmax.f32 %v148, %v149
        %v151 = vrot.slane %v150, 1
        %v152 = vmax.f32 %v150, %v151
        %v153 = vrot.slane %v139, 4
        %v154 = vmax.f32 %v139, %v153
        %v155 = vrot.slane %v154, 2
        %v156 = vmax.f32 %v154, %v155
        %v157 = vrot.slane %v156, 1
        %v158 = vmax.f32 %v156, %v157
        %v159 = vrot.slane %v140, 4
        %v160 = vmax.f32 %v140, %v159
        %v161 = vrot.slane %v160, 2
        %v162 = vmax.f32 %v160, %v161
        %v163 = vrot.slane %v162, 1
        %v164 = vmax.f32 %v162, %v163
        %v165 = vsub.f32 %v137, %v146
        %v166 = vsub.f32 %v138, %v152
        %v167 = vsub.f32 %v139, %v158
        %v168 = vsub.f32 %v140, %v164
        %v169 = vmul.f32 %v165, 1.442695
        %v170 = vpow.pop %v169
        %v171 = vmul.f32 %v166, 1.442695
        %v172 = vpow.pop %v171
        %v173 = vmul.f32 %v167, 1.442695
        %v174 = vpow.pop %v173
        %v175 = vmul.f32 %v168, 1.442695
        %v176 = vpow.pop %v175
        %v177 = vrot.slane %v170, 4
        %v178 = vadd.f32 %v170, %v177
        %v179 = vrot.slane %v178, 2
        %v180 = vadd.f32 %v178, %v179
        %v181 = vrot.slane %v180, 1
        %v182 = vadd.f32 %v180, %v181
        %v183 = vrot.slane %v172, 4
        %v184 = vadd.f32 %v172, %v183
        %v185 = vrot.slane %v184, 2
        %v186 = vadd.f32 %v184, %v185
        %v187 = vrot.slane %v186, 1
        %v188 = vadd.f32 %v186, %v187
        %v189 = vrot.slane %v174, 4
        %v190 = vadd.f32 %v174, %v189
        %v191 = vrot.slane %v190, 2
        %v192 = vadd.f32 %v190, %v191
        %v193 = vrot.slane %v192, 1
        %v194 = vadd.f32 %v192, %v193
        %v195 = vrot.slane %v176, 4
        %v196 = vadd.f32 %v176, %v195
        %v197 = vrot.slane %v196, 2
        %v198 = vadd.f32 %v196, %v197
        %v199 = vrot.slane %v198, 1
        %v200 = vadd.f32 %v198, %v199
        %v201 = vrcp.pop %v182
        %v202 = vmul.f32 %v182, %v201
        %v203 = vsub.f32 1.0, %v202
        %v204 = vmul.f32 %v201, %v203
        %v205 = vadd.f32 %v201, %v204
        %vm206 = vweird.f32 %v182
        %vm207 = vweird.f32 %v201
        %vm208 = vmor %vm206, %vm207
        %v209 = vsel %vm208, %v201, %v205
        %v210 = vand.u32 2147483647, %v182
        %vm211 = vcmp.eq.f32.partialorder %v210, 8.507059e+37
        %v212 = vand.u32 %v182, 2147483648
        %v213 = vor.u32 1.1754944e-38, %v212
        %v214 = vsel %vm211, %v213, %v209
        %v215 = vmul.f32 1.0, %v214
        %v216 = vrcp.pop %v188
        %v217 = vmul.f32 %v188, %v216
        %v218 = vsub.f32 1.0, %v217
        %v219 = vmul.f32 %v216, %v218
        %v220 = vadd.f32 %v216, %v219
        %vm221 = vweird.f32 %v188
        %vm222 = vweird.f32 %v216
        %vm223 = vmor %vm221, %vm222
        %v224 = vsel %vm223, %v216, %v220
        %v225 = vand.u32 2147483647, %v188
        %vm226 = vcmp.eq.f32.partialorder %v225, 8.507059e+37
        %v227 = vand.u32 %v188, 2147483648
        %v228 = vor.u32 1.1754944e-38, %v227
        %v229 = vsel %vm226, %v228, %v224
        %v230 = vmul.f32 1.0, %v229
        %v231 = vrcp.pop %v194
        %v232 = vmul.f32 %v194, %v231
        %v233 = vsub.f32 1.0, %v232
        %v234 = vmul.f32 %v231, %v233
        %v235 = vadd.f32 %v231, %v234
        %vm236 = vweird.f32 %v194
        %vm237 = vweird.f32 %v231
        %vm238 = vmor %vm236, %vm237
        %v239 = vsel %vm238, %v231, %v235
        %v240 = vand.u32 2147483647, %v194
        %vm241 = vcmp.eq.f32.partialorder %v240, 8.507059e+37
        %v242 = vand.u32 %v194, 2147483648
        %v243 = vor.u32 1.1754944e-38, %v242
        %v244 = vsel %vm241, %v243, %v239
        %v245 = vmul.f32 1.0, %v244
        %v246 = vrcp.pop %v200
        %v247 = vmul.f32 %v200, %v246
        %v248 = vsub.f32 1.0, %v247
        %v249 = vmul.f32 %v246, %v248
        %v250 = vadd.f32 %v246, %v249
        %vm251 = vweird.f32 %v200
        %vm252 = vweird.f32 %v246
        %vm253 = vmor %vm251, %vm252
        %v254 = vsel %vm253, %v246, %v250
        %v255 = vand.u32 2147483647, %v200
        %vm256 = vcmp.eq.f32.partialorder %v255, 8.507059e+37
        %v257 = vand.u32 %v200, 2147483648
        %v258 = vor.u32 1.1754944e-38, %v257
        %v259 = vsel %vm256, %v258, %v254
        %v260 = vmul.f32 1.0, %v259
        %v261 = vmul.f32 %v170, %v215
        %v262 = vmul.f32 %v172, %v230
        %v263 = vmul.f32 %v174, %v245
        %v264 = vmul.f32 %v176, %v260
        %265 = vst [vmem:[%s134] sm:$0xff] %v261
        %266 = vst [vmem:[%s134 + $0x8] sm:$0xff] %v262
        %267 = vst [vmem:[%s134 + $0x10] sm:$0xff] %v263
        %268 = vst [vmem:[%s134 + $0x18] sm:$0xff] %v264
        %s269 = sand.u32 %s52, 1
        %s270 = scalar_lea.sflag [#allocation4], %s269
        %s271 = sand.u32 %s52, 1
        %s272 = smul.addr %s271, 32
        %s273 = scalar_lea.vmem [#allocation5], %s272
        // Predicated region
        $region29: #{tpu_custom_call.1} parent=23 // pred_check
          %p274 = pneg %p62
        $region30: #{tpu_custom_call.1} parent=23 // pred_check_branch
          %276 = sbr.rel (%p274) target = $region32
        $region31: #{tpu_custom_call.1} parent=23 // pred_region
          %s277 = smul.u32 4, %s18
          %279 = vsyncadd %s270, 0
          %s280 = smul.addr %s277, 8
          %s281 = scalar_lea.hbm %s1, %s280
          %s283 = sshll.u32 %s273, 4
          %s284 = int_to_ptr.vmem [resolvable:$true] %s283
          %s285 = sshll.u32 %s281, 4
          %s286 = int_to_ptr.hbm [resolvable:$true] %s285
          %288 = dma.vmem_to_hbm [thread:$0]  %s284, 512, %s286, %s270
        $region32: #{tpu_custom_call.1} parent=23 // pred_fallthru
          _
      $region24: #{tpu_custom_call.1} parent=5 // pred_fallthru
        _
      %p289 = scmp.le.s32.totalorder 2, %s13
      // Predicated region
      $region33: #{tpu_custom_call.1} parent=5 // pred_check
        %p290 = pneg %p289
      $region34: #{tpu_custom_call.1} parent=5 // pred_check_branch
        %292 = sbr.rel (%p290) target = $region36
      $region35: #{tpu_custom_call.1} parent=5 // pred_region
        %s293 = ssub.s32 %s13, 2
        // Predicated region
        $region37: #{tpu_custom_call.1} parent=35 // pred_check
          %p294 = pneg %p68
        $region38: #{tpu_custom_call.1} parent=35 // pred_check_branch
          %296 = sbr.rel (%p294) target = $region40
        $region39: #{tpu_custom_call.1} parent=35 // pred_region
          %s297 = sand.u32 %s53, 1
          %s298 = scalar_lea.sflag [#allocation4], %s297
          %s299 = sand.u32 %s53, 1
          %s300 = smul.addr %s299, 32
          %s301 = scalar_lea.vmem [#allocation5], %s300
          %303 = dma.done %s298, 512
        $region40: #{tpu_custom_call.1} parent=35 // pred_fallthru
          _
      $region36: #{tpu_custom_call.1} parent=5 // pred_fallthru
        _
    $region6: #{tpu_custom_call.1} parent=1 // loop_footer
      %s17 = sadd.s32 1, %s13
    $region7: #{tpu_custom_call.1} parent=1 // loop_footer_branch
      %12 = sbr.rel target = $region3
    $region8: #{tpu_custom_call.1} parent=1 // loop_exit
      _
    %304 = vsyncpa [#allocation3], 1
    %s305 = scalar_lea.sflag [#allocation3], 1
    %306 = vsyncpa %s305, 1
    %307 = vsyncpa [#allocation4], 1
    %s308 = scalar_lea.sflag [#allocation4], 1
    %309 = vsyncpa %s308, 1

</llo_original>
